<compile_context>
chip_gen: v7x
topology: tpu7x:2x2x1
jax: 0.10.0
libtpu: 0.0.40
codegen_flags: <defaults>
</compile_context>

<pallas_src>
import jax
import jax.numpy as jnp
from jax import lax
from jax.experimental import pallas as pl
from jax.experimental.pallas import tpu as pltpu

LANE = 128


def _round_up(n, m):
    return ((n + m - 1) // m) * m


def self_attention_kernel(x_ref, w_qkv_ref, b_qkv_ref, mask_ref, out_ref, attn_ref):
    """One grid step == one batch element.

    x_ref:     (1, S, D)    input block (real feature width D)
    w_qkv_ref: (D, 3*Dp)    [Wq^T | Wk^T | Wv^T], each zero-padded to Dp lanes
    b_qkv_ref: (1, 3*Dp)    [bq | bk | bv], zero-padded
    mask_ref:  (1, Dp)      additive column mask: 0 for cols < D, -inf otherwise
    out_ref:   (1, S, Dp)   lane-dense output block (cols >= D are exact zeros)
    attn_ref:  (1, D, Dp)   lane-dense attention block (real rows only)
    """
    D = x_ref.shape[2]
    Dp = mask_ref.shape[1]

    x = x_ref[0]                                                     # (S, D)

    # Fused QKV projection: a single MXU contraction (S, D) @ (D, 3*Dp).
    qkv = jnp.dot(x, w_qkv_ref[...],
                  preferred_element_type=jnp.float32) + b_qkv_ref[...]   # (S, 3*Dp)
    q = qkv[:, 0 * Dp:1 * Dp]                                        # (S, Dp), lane-aligned
    k = qkv[:, 1 * Dp:2 * Dp]                                        # (S, Dp), lane-aligned
    v = qkv[:, 2 * Dp:2 * Dp + D]                                    # (S, D)  real features only

    # energy = q^T @ k: contract over the seq axis (no materialized transpose).
    energy = lax.dot_general(q, k, (((0,), (0,)), ((), ())),
                             preferred_element_type=jnp.float32)     # (Dp, Dp)

    # Keep only the D real query-feature rows; mask padded key-feature columns
    # with a single lane-broadcast add of the precomputed 0 / -inf mask.
    energy = energy[:D, :] + mask_ref[...]                           # (D, Dp)

    # Numerically stable softmax along the last axis (EUP work on D rows only).
    m = jnp.max(energy, axis=-1, keepdims=True)
    e = jnp.exp(energy - m)
    s = jnp.sum(e, axis=-1, keepdims=True)
    r = pl.reciprocal(s, approx=True)
    r = r * (2.0 - s * r)              # one Newton-Raphson step -> ~1e-7 rel err
    attn = e * r                                                     # (D, Dp)

    # out = v @ attn over the D real features; masked attn columns are exactly 0,
    # so out columns >= D come out as exact zeros (sliced off in the wrapper).
    out = jnp.dot(v, attn, preferred_element_type=jnp.float32)       # (S, Dp)

    attn_ref[0] = attn.astype(attn_ref.dtype)
    out_ref[0] = out.astype(out_ref.dtype)


def prepare_params(wq, bq, wk, bk, wv, bv):
    """One-time (init-time) fusion + lane padding of the three Linear layers.

    PyTorch Linear weights are (out, in); we store W^T so the kernel does x @ W^T.
    """
    D = wq.shape[0]
    Dp = _round_up(D, LANE)

    def pad_w(w):                     # (out, in) -> (in, out_padded)
        return jnp.pad(w.T, ((0, 0), (0, Dp - D)))

    def pad_b(b):
        return jnp.pad(b, (0, Dp - D))

    w_qkv = jnp.concatenate([pad_w(wq), pad_w(wk), pad_w(wv)], axis=1)      # (D, 3*Dp)
    b_qkv = jnp.concatenate([pad_b(bq), pad_b(bk), pad_b(bv)], axis=0)
    b_qkv = b_qkv.reshape(1, 3 * Dp)                                        # (1, 3*Dp)
    col = lax.iota(jnp.int32, Dp).reshape(1, Dp)
    col_mask = jnp.where(col < D, 0.0, -jnp.inf).astype(jnp.float32)        # (1, Dp)
    return w_qkv, b_qkv, col_mask


@jax.jit
def self_attention(x, w_qkv, b_qkv, col_mask):
    """x: (B, S, D); fused params from prepare_params(). Returns (out, attn)."""
    B, S, D = x.shape
    Dp = col_mask.shape[1]

    out_p, attn_p = pl.pallas_call(
        self_attention_kernel,
        grid=(B,),
        out_shape=(
            jax.ShapeDtypeStruct((B, S, Dp), x.dtype),
            jax.ShapeDtypeStruct((B, D, Dp), x.dtype),
        ),
        in_specs=[
            pl.BlockSpec((1, S, D), lambda b: (b, 0, 0)),
            pl.BlockSpec((D, 3 * Dp), lambda b: (0, 0)),      # VMEM-resident across steps
            pl.BlockSpec((1, 3 * Dp), lambda b: (0, 0)),
            pl.BlockSpec((1, Dp), lambda b: (0, 0)),
        ],
        out_specs=(
            pl.BlockSpec((1, S, Dp), lambda b: (b, 0, 0)),
            pl.BlockSpec((1, D, Dp), lambda b: (b, 0, 0)),
        ),
        compiler_params=pltpu.CompilerParams(
            dimension_semantics=("parallel",)),   # v7x: one batch per TensorCore
    )(x, w_qkv, b_qkv, col_mask)

    # Strip lane padding outside the kernel (cheap XLA slices).
    return out_p[:, :, :D], attn_p[:, :, :D]


def self_attention_ref(x, wq, bq, wk, bk, wv, bv):
    """Pure-JAX reference mirroring the PyTorch forward."""
    q = jnp.einsum("bsd,ed->bse", x, wq) + bq      # Linear: x @ W.T + b
    k = jnp.einsum("bsd,ed->bse", x, wk) + bk
    v = jnp.einsum("bsd,ed->bse", x, wv) + bv
    query = jnp.swapaxes(q, 1, 2)                  # (B, D, S)
    energy = jnp.einsum("bds,bse->bde", query, k)  # (B, D, D)
    attn = jax.nn.softmax(energy, axis=-1)
    out = jnp.einsum("bsd,bde->bse", v, attn)      # (B, S, D)
    return out, attn


if __name__ == "__main__":
    B, S, D = 2, 8, 32  # input_size = D = 32
    key = jax.random.PRNGKey(0)
    kx, kq, kbq, kk, kbk, kv, kbv = jax.random.split(key, 7)

    x = jax.random.normal(kx, (B, S, D), dtype=jnp.float32)
    # deterministic parameter init (PyTorch Linear weight shape: (out, in))
    wq = jax.random.normal(kq, (D, D), dtype=jnp.float32) * 0.1
    bq = jax.random.normal(kbq, (D,), dtype=jnp.float32) * 0.1
    wk = jax.random.normal(kk, (D, D), dtype=jnp.float32) * 0.1
    bk = jax.random.normal(kbk, (D,), dtype=jnp.float32) * 0.1
    wv = jax.random.normal(kv, (D, D), dtype=jnp.float32) * 0.1
    bv = jax.random.normal(kbv, (D,), dtype=jnp.float32) * 0.1

    # Init-time parameter fusion/padding (hoisted out of the per-call hot path).
    w_qkv, b_qkv, col_mask = jax.block_until_ready(
        prepare_params(wq, bq, wk, bk, wv, bv))

    out, attn = self_attention(x, w_qkv, b_qkv, col_mask)
    out, attn = jax.block_until_ready((out, attn))

    out_ref, attn_ref = self_attention_ref(x, wq, bq, wk, bk, wv, bv)
    assert out.shape == (B, S, D) and attn.shape == (B, D, D)
    assert jnp.allclose(out, out_ref, atol=1e-4, rtol=1e-4)
    assert jnp.allclose(attn, attn_ref, atol=1e-4, rtol=1e-4)

    print("KERNEL_OK")
</pallas_src>

<mosaic_0001>
module attributes {stable_mosaic.version = 11 : i64} {
  func.func @self_attention_kernel(%arg0: i32, %arg1: memref<1x8x32xf32, #tpu.memory_space<vmem>>, %arg2: memref<32x384xf32, #tpu.memory_space<vmem>>, %arg3: memref<1x384xf32, #tpu.memory_space<vmem>>, %arg4: memref<1x128xf32, #tpu.memory_space<vmem>>, %arg5: memref<1x8x128xf32, #tpu.memory_space<vmem>>, %arg6: memref<1x32x128xf32, #tpu.memory_space<vmem>>) attributes {dimension_semantics = [#tpu.dimension_semantics<parallel>], iteration_bounds = array<i64: 2>, scalar_prefetch = 0 : i64, scratch_operands = 0 : i64, tpu.core_type = #tpu.core_type<tc>, window_params = [{transform_indices = @transform_0, window_bounds = array<i64: 1, 8, 32>}, {pipeline_mode = #tpu.pipeline_mode<synchronous>, transform_indices = @transform_1, window_bounds = array<i64: 32, 384>}, {pipeline_mode = #tpu.pipeline_mode<synchronous>, transform_indices = @transform_2, window_bounds = array<i64: 1, 384>}, {pipeline_mode = #tpu.pipeline_mode<synchronous>, transform_indices = @transform_3, window_bounds = array<i64: 1, 128>}, {transform_indices = @transform_4, window_bounds = array<i64: 1, 8, 128>}, {transform_indices = @transform_5, window_bounds = array<i64: 1, 32, 128>}]} {
    %c0 = arith.constant 0 : index
    %c0_0 = arith.constant 0 : index
    %c0_1 = arith.constant 0 : index
    %0 = vector.load %arg1[%c0, %c0_0, %c0_1] : memref<1x8x32xf32, #tpu.memory_space<vmem>>, vector<1x8x32xf32>
    %1 = vector.shape_cast %0 : vector<1x8x32xf32> to vector<8x32xf32>
    %c0_2 = arith.constant 0 : index
    %c0_3 = arith.constant 0 : index
    %2 = vector.load %arg2[%c0_2, %c0_3] : memref<32x384xf32, #tpu.memory_space<vmem>>, vector<32x384xf32>
    %cst = arith.constant dense<0.000000e+00> : vector<8x384xf32>
    %3 = tpu.matmul %1, %2, %cst {dimension_numbers = #tpu.dot_dimension_numbers<[1], [0], [0], [1], [0, 0, 1, 1], [], []>} : vector<8x32xf32>, vector<32x384xf32>, vector<8x384xf32> -> vector<8x384xf32>
    %c0_4 = arith.constant 0 : index
    %c0_5 = arith.constant 0 : index
    %4 = vector.load %arg3[%c0_4, %c0_5] : memref<1x384xf32, #tpu.memory_space<vmem>>, vector<1x384xf32>
    %5 = vector.broadcast %4 : vector<1x384xf32> to vector<8x384xf32>
    %6 = arith.addf %3, %5 : vector<8x384xf32>
    %7 = vector.extract_strided_slice %6 {offsets = [0, 0], sizes = [8, 128], strides = [1, 1]} : vector<8x384xf32> to vector<8x128xf32>
    %8 = vector.extract_strided_slice %6 {offsets = [0, 128], sizes = [8, 128], strides = [1, 1]} : vector<8x384xf32> to vector<8x128xf32>
    %9 = vector.extract_strided_slice %6 {offsets = [0, 256], sizes = [8, 32], strides = [1, 1]} : vector<8x384xf32> to vector<8x32xf32>
    %cst_6 = arith.constant dense<0.000000e+00> : vector<128x128xf32>
    %10 = tpu.matmul %7, %8, %cst_6 {dimension_numbers = #tpu.dot_dimension_numbers<[0], [0], [1], [1], [0, 1, 1, 1], [], []>} : vector<8x128xf32>, vector<8x128xf32>, vector<128x128xf32> -> vector<128x128xf32>
    %11 = vector.extract_strided_slice %10 {offsets = [0, 0], sizes = [32, 128], strides = [1, 1]} : vector<128x128xf32> to vector<32x128xf32>
    %c0_7 = arith.constant 0 : index
    %c0_8 = arith.constant 0 : index
    %12 = vector.load %arg4[%c0_7, %c0_8] : memref<1x128xf32, #tpu.memory_space<vmem>>, vector<1x128xf32>
    %13 = vector.broadcast %12 : vector<1x128xf32> to vector<32x128xf32>
    %14 = arith.addf %11, %13 : vector<32x128xf32>
    %cst_9 = arith.constant dense<0xFF800000> : vector<32xf32>
    %15 = vector.multi_reduction <maximumf>, %14, %cst_9 [1] : vector<32x128xf32> to vector<32xf32>
    %16 = vector.shape_cast %15 : vector<32xf32> to vector<32x1xf32>
    %17 = vector.broadcast %16 : vector<32x1xf32> to vector<32x128xf32>
    %18 = arith.subf %14, %17 : vector<32x128xf32>
    %19 = math.exp %18 : vector<32x128xf32>
    %cst_10 = arith.constant dense<0.000000e+00> : vector<32xf32>
    %20 = vector.multi_reduction <add>, %19, %cst_10 [1] : vector<32x128xf32> to vector<32xf32>
    %21 = vector.shape_cast %20 : vector<32xf32> to vector<32x1xf32>
    %22 = tpu.reciprocal %21 {approx = true} : vector<32x1xf32> -> vector<32x1xf32>
    %23 = arith.mulf %21, %22 : vector<32x1xf32>
    %cst_11 = arith.constant 2.000000e+00 : f32
    %24 = vector.broadcast %cst_11 : f32 to vector<32x1xf32>
    %25 = arith.subf %24, %23 : vector<32x1xf32>
    %26 = arith.mulf %22, %25 : vector<32x1xf32>
    %27 = vector.broadcast %26 : vector<32x1xf32> to vector<32x128xf32>
    %28 = arith.mulf %19, %27 : vector<32x128xf32>
    %cst_12 = arith.constant dense<0.000000e+00> : vector<8x128xf32>
    %29 = tpu.matmul %9, %28, %cst_12 {dimension_numbers = #tpu.dot_dimension_numbers<[1], [0], [0], [1], [0, 0, 1, 1], [], []>} : vector<8x32xf32>, vector<32x128xf32>, vector<8x128xf32> -> vector<8x128xf32>
    %c0_13 = arith.constant 0 : index
    %c0_14 = arith.constant 0 : index
    %c0_15 = arith.constant 0 : index
    %30 = vector.load %arg6[%c0_13, %c0_14, %c0_15] : memref<1x32x128xf32, #tpu.memory_space<vmem>>, vector<1x32x128xf32>
    %31 = vector.shape_cast %30 : vector<1x32x128xf32> to vector<32x128xf32>
    %32 = vector.shape_cast %28 : vector<32x128xf32> to vector<1x32x128xf32>
    tpu.vector_store %arg6[%c0_13, %c0_14, %c0_15], %32 {strides = array<i32>} : memref<1x32x128xf32, #tpu.memory_space<vmem>>, vector<1x32x128xf32>,
    %c0_16 = arith.constant 0 : index
    %c0_17 = arith.constant 0 : index
    %c0_18 = arith.constant 0 : index
    %33 = vector.load %arg5[%c0_16, %c0_17, %c0_18] : memref<1x8x128xf32, #tpu.memory_space<vmem>>, vector<1x8x128xf32>
    %34 = vector.shape_cast %33 : vector<1x8x128xf32> to vector<8x128xf32>
    %35 = vector.shape_cast %29 : vector<8x128xf32> to vector<1x8x128xf32>
    tpu.vector_store %arg5[%c0_16, %c0_17, %c0_18], %35 {strides = array<i32>} : memref<1x8x128xf32, #tpu.memory_space<vmem>>, vector<1x8x128xf32>,
    return
  }
  func.func @transform_0(%arg0: i32) -> (i32, i32, i32) {
    %c0_i32 = arith.constant 0 : i32
    %c0_i32_0 = arith.constant 0 : i32
    %c0_i32_1 = arith.constant 0 : i32
    return %arg0, %c0_i32, %c0_i32_0 : i32, i32, i32
  }
  func.func @transform_1(%arg0: i32) -> (i32, i32) {
    %c0_i32 = arith.constant 0 : i32
    %c0_i32_0 = arith.constant 0 : i32
    %c0_i32_1 = arith.constant 0 : i32
    return %c0_i32, %c0_i32_0 : i32, i32
  }
  func.func @transform_2(%arg0: i32) -> (i32, i32) {
    %c0_i32 = arith.constant 0 : i32
    %c0_i32_0 = arith.constant 0 : i32
    %c0_i32_1 = arith.constant 0 : i32
    return %c0_i32, %c0_i32_0 : i32, i32
  }
  func.func @transform_3(%arg0: i32) -> (i32, i32) {
    %c0_i32 = arith.constant 0 : i32
    %c0_i32_0 = arith.constant 0 : i32
    %c0_i32_1 = arith.constant 0 : i32
    return %c0_i32, %c0_i32_0 : i32, i32
  }
  func.func @transform_4(%arg0: i32) -> (i32, i32, i32) {
    %c0_i32 = arith.constant 0 : i32
    %c0_i32_0 = arith.constant 0 : i32
    %c0_i32_1 = arith.constant 0 : i32
    return %arg0, %c0_i32, %c0_i32_0 : i32, i32, i32
  }
  func.func @transform_5(%arg0: i32) -> (i32, i32, i32) {
    %c0_i32 = arith.constant 0 : i32
    %c0_i32_0 = arith.constant 0 : i32
    %c0_i32_1 = arith.constant 0 : i32
    return %arg0, %c0_i32, %c0_i32_0 : i32, i32, i32
  }
}

</mosaic_0001>

<llo_original>
// kernel: self_attention.1
$region0: #{self_attention.1}
  #allocation0 [shape = 'u32[]', space=smem, size = 0x4, offset = 0x4, fixed_abs, tag = 'smem constant byte address 0x4 - core index']
  #allocation1 [shape = 'u32[144,128]{1,0:T(1,128)}', space=vmem, size = 0x12000, scoped, tag = 'internal scratch']
  %s0 = inlined_call_operand.hbm [shape: f32[2,8,32], index: 0, kind: input, shape index: {}]
  %s1 = inlined_call_operand.hbm [shape: f32[32,384], index: 1, kind: input, shape index: {}]
  %s2 = inlined_call_operand.vmem [shape: f32[1,384], index: 2, kind: input, shape index: {}]
  %s3 = inlined_call_operand.vmem [shape: f32[1,128], index: 3, kind: input, shape index: {}]
  %s4 = inlined_call_operand.hbm [shape: f32[2,8,128], index: 4, kind: output, shape index: {0}]
  %s5 = inlined_call_operand.hbm [shape: f32[2,32,128], index: 5, kind: output, shape index: {1}]
  %6 = xla_tuple %s4, %s5
  %s7 = sld [smem:[#allocation0]]
  $region65: #{self_attention.1} parent=0
    _
  %s9 = ssub.s32 1, %s7
  %s10 = scalar_select 0, %s9, %s7
  $region1: #{self_attention.1} parent=0
    #allocation2 [shape = 'u8[8192]{0}', space=vmem, size = 0x2000, scoped, tag = 'input window, operand 0']
    #allocation3 [shape = 's32[2]{0}', space=sflag, size = 0x8, scoped, tag = 'scoped memory for self_attention.1']
    #allocation4 [shape = 's32[2]{0}', space=sflag, size = 0x8, scoped, tag = 'scoped memory for self_attention.1']
    #allocation5 [shape = 'u8[49152]{0}', space=vmem, size = 0xc000, scoped, tag = 'input window, operand 1, single buffered']
    #allocation6 [shape = 's32[1]{0}', space=sflag, size = 0x4, scoped, tag = 'scoped memory for self_attention.1']
    #allocation7 [shape = 'u8[8192]{0}', space=vmem, size = 0x2000, scoped, tag = 'output window, operand 0']
    #allocation8 [shape = 'u8[32768]{0}', space=vmem, size = 0x8000, scoped, tag = 'output window, operand 1']
    #allocation9 [shape = 's32[2]{0}', space=sflag, size = 0x8, scoped, tag = 'scoped memory for self_attention.1']
    %11 = vsyncpa [#allocation3], 0
    %s12 = scalar_lea.sflag [#allocation3], 1
    %13 = vsyncpa %s12, 0
    %14 = vsyncpa [#allocation6], 0
    %15 = vsyncpa [#allocation4], 0
    %s16 = scalar_lea.sflag [#allocation4], 1
    %17 = vsyncpa %s16, 0
    %18 = vsyncpa [#allocation9], 0
    %s19 = scalar_lea.sflag [#allocation9], 1
    %20 = vsyncpa %s19, 0
    loop: start=0, step=1, limit=4
    $region2: #{self_attention.1} parent=1 // loop_pre_header
      _
    $region3: #{self_attention.1} parent=1 // loop_header
      %s22 = sphi 0, %s26
      %p23 = scmp.ge.s32.totalorder %s22, 4
      %s32 = sphi 0, %s34
      %s35 = sphi 0, %s32
      %s36 = sphi 0, %s35
      %s52 = sphi 0, %s36
      %s56 = sphi 0, %s56
      %s58 = sphi 0, %s56
      %s59 = sphi 0, %s58
      %s73 = sphi 0, %s59
      %s77 = sphi 0, %s77
      %s79 = sphi 0, %s77
      %s80 = sphi 0, %s79
      %s94 = sphi 0, %s80
      %s98 = sphi 0, %s98
      %s100 = sphi 0, %s98
      %s101 = sphi 0, %s100
      %s115 = sphi 0, %s101
      %s121 = sphi 0, %s123
      %s124 = sphi 0, %s121
      %s125 = sphi 0, %s124
      %s141 = sphi 0, %s125
      %s147 = sphi 0, %s149
      %s150 = sphi 0, %s147
      %s151 = sphi 0, %s150
      %s167 = sphi 0, %s151
    $region4: #{self_attention.1} parent=1 // loop_header_branch
      %25 = sbr.rel (%p23) target = $region8
    $region5: #{self_attention.1} parent=1 // loop_body
      %s27 = ssub.s32 %s22, 1
      %s28 = ssub.s32 %s22, 2
      %s29 = sadd.s32 %s22, 1
      %s30 = ssub.s32 %s22, %s29
      %p31 = scmp.eq.s32.totalorder %s30, 0
      %s33 = sadd.s32 %s32, 1
      %s34 = scalar_select %p31, %s32, %s33
      %p37 = pneg %p31
      %p38 = scmp.eq.s32.totalorder %s22, 1
      %p39 = por %p37, %p38
      %p40 = scmp.ne.s32.totalorder %s32, %s35
      %p41 = scmp.eq.s32.totalorder %s22, 0
      %p42 = por %p40, %p41
      %p43 = scmp.ne.s32.totalorder %s32, %s35
      %p44 = scmp.eq.s32.totalorder %s27, 1
      %p45 = por %p43, %p44
      %p46 = scmp.ne.s32.totalorder %s35, %s36
      %p47 = scmp.eq.s32.totalorder %s27, 0
      %p48 = por %p46, %p47
      %p49 = scmp.ne.s32.totalorder %s35, %s36
      %p50 = scmp.eq.s32.totalorder %s28, 1
      %p51 = por %p49, %p50
      %p53 = scmp.ne.s32.totalorder %s36, %s52
      %p54 = scmp.eq.s32.totalorder %s28, 0
      %p55 = por %p53, %p54
      %s57 = sadd.s32 %s56, 1
      %p60 = scmp.eq.s32.totalorder %s22, 1
      %p61 = scmp.ne.s32.totalorder %s56, %s58
      %p62 = scmp.eq.s32.totalorder %s22, 0
      %p63 = por %p61, %p62
      %p64 = scmp.ne.s32.totalorder %s56, %s58
      %p65 = scmp.eq.s32.totalorder %s27, 1
      %p66 = por %p64, %p65
      %p67 = scmp.ne.s32.totalorder %s58, %s59
      %p68 = scmp.eq.s32.totalorder %s27, 0
      %p69 = por %p67, %p68
      %p70 = scmp.ne.s32.totalorder %s58, %s59
      %p71 = scmp.eq.s32.totalorder %s28, 1
      %p72 = por %p70, %p71
      %p74 = scmp.ne.s32.totalorder %s59, %s73
      %p75 = scmp.eq.s32.totalorder %s28, 0
      %p76 = por %p74, %p75
      %s78 = sadd.s32 %s77, 1
      %p81 = scmp.eq.s32.totalorder %s22, 1
      %p82 = scmp.ne.s32.totalorder %s77, %s79
      %p83 = scmp.eq.s32.totalorder %s22, 0
      %p84 = por %p82, %p83
      %p85 = scmp.ne.s32.totalorder %s77, %s79
      %p86 = scmp.eq.s32.totalorder %s27, 1
      %p87 = por %p85, %p86
      %p88 = scmp.ne.s32.totalorder %s79, %s80
      %p89 = scmp.eq.s32.totalorder %s27, 0
      %p90 = por %p88, %p89
      %p91 = scmp.ne.s32.totalorder %s79, %s80
      %p92 = scmp.eq.s32.totalorder %s28, 1
      %p93 = por %p91, %p92
      %p95 = scmp.ne.s32.totalorder %s80, %s94
      %p96 = scmp.eq.s32.totalorder %s28, 0
      %p97 = por %p95, %p96
      %s99 = sadd.s32 %s98, 1
      %p102 = scmp.eq.s32.totalorder %s22, 1
      %p103 = scmp.ne.s32.totalorder %s98, %s100
      %p104 = scmp.eq.s32.totalorder %s22, 0
      %p105 = por %p103, %p104
      %p106 = scmp.ne.s32.totalorder %s98, %s100
      %p107 = scmp.eq.s32.totalorder %s27, 1
      %p108 = por %p106, %p107
      %p109 = scmp.ne.s32.totalorder %s100, %s101
      %p110 = scmp.eq.s32.totalorder %s27, 0
      %p111 = por %p109, %p110
      %p112 = scmp.ne.s32.totalorder %s100, %s101
      %p113 = scmp.eq.s32.totalorder %s28, 1
      %p114 = por %p112, %p113
      %p116 = scmp.ne.s32.totalorder %s101, %s115
      %p117 = scmp.eq.s32.totalorder %s28, 0
      %p118 = por %p116, %p117
      %s119 = ssub.s32 %s22, %s29
      %p120 = scmp.eq.s32.totalorder %s119, 0
      %s122 = sadd.s32 %s121, 1
      %s123 = scalar_select %p120, %s121, %s122
      %p126 = pneg %p120
      %p127 = scmp.eq.s32.totalorder %s22, 1
      %p128 = por %p126, %p127
      %p129 = scmp.ne.s32.totalorder %s121, %s124
      %p130 = scmp.eq.s32.totalorder %s22, 0
      %p131 = por %p129, %p130
      %p132 = scmp.ne.s32.totalorder %s121, %s124
      %p133 = scmp.eq.s32.totalorder %s27, 1
      %p134 = por %p132, %p133
      %p135 = scmp.ne.s32.totalorder %s124, %s125
      %p136 = scmp.eq.s32.totalorder %s27, 0
      %p137 = por %p135, %p136
      %p138 = scmp.ne.s32.totalorder %s124, %s125
      %p139 = scmp.eq.s32.totalorder %s28, 1
      %p140 = por %p138, %p139
      %p142 = scmp.ne.s32.totalorder %s125, %s141
      %p143 = scmp.eq.s32.totalorder %s28, 0
      %p144 = por %p142, %p143
      %s145 = ssub.s32 %s22, %s29
      %p146 = scmp.eq.s32.totalorder %s145, 0
      %s148 = sadd.s32 %s147, 1
      %s149 = scalar_select %p146, %s147, %s148
      %p152 = pneg %p146
      %p153 = scmp.eq.s32.totalorder %s22, 1
      %p154 = por %p152, %p153
      %p155 = scmp.ne.s32.totalorder %s147, %s150
      %p156 = scmp.eq.s32.totalorder %s22, 0
      %p157 = por %p155, %p156
      %p158 = scmp.ne.s32.totalorder %s147, %s150
      %p159 = scmp.eq.s32.totalorder %s27, 1
      %p160 = por %p158, %p159
      %p161 = scmp.ne.s32.totalorder %s150, %s151
      %p162 = scmp.eq.s32.totalorder %s27, 0
      %p163 = por %p161, %p162
      %p164 = scmp.ne.s32.totalorder %s150, %s151
      %p165 = scmp.eq.s32.totalorder %s28, 1
      %p166 = por %p164, %p165
      %p168 = scmp.ne.s32.totalorder %s151, %s167
      %p169 = scmp.eq.s32.totalorder %s28, 0
      %p170 = por %p168, %p169
      %p171 = scmp.le.s32.totalorder 1, %s22
      %p172 = scmp.lt.s32.totalorder %s22, 3
      %p173 = pnand %p171, %p172
      %p174 = pneg %p173
      // Predicated region
      $region9: #{self_attention.1} parent=5 // pred_check
        _
      $region10: #{self_attention.1} parent=5 // pred_check_branch
        %176 = sbr.rel (%p173) target = $region12
      $region11: #{self_attention.1} parent=5 // pred_region
        %s177 = ssub.s32 %s22, 1
        // Predicated region
        $region13: #{self_attention.1} parent=11 // pred_check
          %p178 = pneg %p69
        $region14: #{self_attention.1} parent=11 // pred_check_branch
          %180 = sbr.rel (%p178) target = $region16
        $region15: #{self_attention.1} parent=11 // pred_region
          %s182 = ssub.s32 1536, 1536
          %183 = vsyncadd [#allocation6], %s182
          %s184 = sshll.u32 [#allocation5], 4
          %s185 = int_to_ptr.vmem [resolvable:$true] %s184
          %190 = dma.hbm_to_vmem [thread:$0]  %s1, 1536, %s185, [#allocation6], 384, 384, 24
        $region16: #{self_attention.1} parent=11 // pred_fallthru
          _
        // Predicated region
        $region17: #{self_attention.1} parent=11 // pred_check
          %p191 = pneg %p90
        $region18: #{self_attention.1} parent=11 // pred_check_branch
          %193 = sbr.rel (%p191) target = $region20
        $region19: #{self_attention.1} parent=11 // pred_region
          _
        $region20: #{self_attention.1} parent=11 // pred_fallthru
          _
        // Predicated region
        $region21: #{self_attention.1} parent=11 // pred_check
          %p194 = pneg %p111
        $region22: #{self_attention.1} parent=11 // pred_check_branch
          %196 = sbr.rel (%p194) target = $region24
        $region23: #{self_attention.1} parent=11 // pred_region
          _
        $region24: #{self_attention.1} parent=11 // pred_fallthru
          _
      $region12: #{self_attention.1} parent=5 // pred_fallthru
        _
      %p197 = scmp.lt.s32.totalorder %s22, 2
      // Predicated region
      $region25: #{self_attention.1} parent=5 // pred_check
        %p198 = pneg %p197
      $region26: #{self_attention.1} parent=5 // pred_check_branch
        %200 = sbr.rel (%p198) target = $region28
      $region27: #{self_attention.1} parent=5 // pred_region
        // Predicated region
        $region29: #{self_attention.1} parent=27 // pred_check
          %p201 = pneg %p42
        $region30: #{self_attention.1} parent=27 // pred_check_branch
          %203 = sbr.rel (%p201) target = $region32
        $region31: #{self_attention.1} parent=27 // pred_region
          %s204 = sand.u32 %s32, 1
          %s205 = scalar_lea.sflag [#allocation3], %s204
          %s206 = sand.u32 %s32, 1
          %s207 = smul.addr %s206, 8
          %s208 = scalar_lea.vmem [#allocation2], %s207
          %s210 = ssub.s32 128, 128
          %211 = vsyncadd %s205, %s210
          %s212 = smul.addr %s22, 128
          %s213 = scalar_lea.hbm %s0, %s212
          %s215 = sshll.u32 %s208, 4
          %s216 = int_to_ptr.vmem [resolvable:$true] %s215
          %218 = dma.hbm_to_vmem [thread:$0]  %s213, 128, %s216, %s205
        $region32: #{self_attention.1} parent=27 // pred_fallthru
          _
      $region28: #{self_attention.1} parent=5 // pred_fallthru
        _
      %p219 = scmp.le.s32.totalorder 1, %s22
      %p220 = scmp.lt.s32.totalorder %s22, 3
      %p221 = pnand %p219, %p220
      %p222 = pneg %p221
      // Predicated region
      $region33: #{self_attention.1} parent=5 // pred_check
        _
      $region34: #{self_attention.1} parent=5 // pred_check_branch
        %224 = sbr.rel (%p221) target = $region36
      $region35: #{self_attention.1} parent=5 // pred_region
        %s225 = ssub.s32 %s22, 1
        %s226 = sand.u32 %s35, 1
        %s227 = scalar_lea.sflag [#allocation3], %s226
        %s228 = sand.u32 %s35, 1
        %s229 = smul.addr %s228, 8
        %s230 = scalar_lea.vmem [#allocation2], %s229
        // Predicated region
        $region37: #{self_attention.1} parent=35 // pred_check
          %p231 = pneg %p48
        $region38: #{self_attention.1} parent=35 // pred_check_branch
          %233 = sbr.rel (%p231) target = $region40
        $region39: #{self_attention.1} parent=35 // pred_region
          %234 = dma.done %s227, 128
        $region40: #{self_attention.1} parent=35 // pred_fallthru
          _
        // Predicated region
        $region41: #{self_attention.1} parent=35 // pred_check
          %p235 = pneg %p69
        $region42: #{self_attention.1} parent=35 // pred_check_branch
          %237 = sbr.rel (%p235) target = $region44
        $region43: #{self_attention.1} parent=35 // pred_region
          %238 = dma.done [#allocation6], 1536
        $region44: #{self_attention.1} parent=35 // pred_fallthru
          _
        %s239 = sand.u32 %s35, 1
        %s240 = scalar_lea.sflag [#allocation3], %s239
        %s241 = sand.u32 %s35, 1
        %s242 = smul.addr %s241, 8
        %s243 = scalar_lea.vmem [#allocation2], %s242
        %p244 = pneg %p48
        %p245 = pneg %p45
        %p246 = pneg %p69
        %p247 = pneg %p66
        %p248 = pneg %p90
        %p249 = pneg %p87
        %p250 = pneg %p111
        %p251 = pneg %p108
        %p252 = pneg %p137
        %p253 = pneg %p134
        %s254 = sand.u32 %s124, 1
        %s255 = scalar_lea.sflag [#allocation4], %s254
        %s256 = sand.u32 %s124, 1
        %s257 = smul.addr %s256, 8
        %s258 = scalar_lea.vmem [#allocation7], %s257
        %p259 = pneg %p163
        %p260 = pneg %p160
        %s261 = sand.u32 %s150, 1
        %s262 = scalar_lea.sflag [#allocation9], %s261
        %s263 = sand.u32 %s150, 1
        %s264 = smul.addr %s263, 32
        %s265 = scalar_lea.vmem [#allocation8], %s264
        %v266 = vld [vmem:[%s230] sm:$0xff]
        %v267 = vld [vmem:[#allocation5] sm:$0xff]
        %v268 = vld [vmem:[#allocation5 + $0x8] sm:$0xff]
        %v269 = vld [vmem:[#allocation5 + $0x10] sm:$0xff]
        %v270 = vld [vmem:[#allocation5 + $0x18] sm:$0xff]
        %v271 = vld [vmem:[#allocation5 + $0x20] sm:$0xff]
        %v272 = vld [vmem:[#allocation5 + $0x28] sm:$0xff]
        %v273 = vld [vmem:[#allocation5 + $0x30] sm:$0xff]
        %v274 = vld [vmem:[#allocation5 + $0x38] sm:$0xff]
        %v275 = vld [vmem:[#allocation5 + $0x40] sm:$0xff]
        %v276 = vld [vmem:[#allocation5 + $0x48] sm:$0xff]
        %v277 = vld [vmem:[#allocation5 + $0x50] sm:$0xff]
        %v278 = vld [vmem:[#allocation5 + $0x58] sm:$0xff]
        %v279 = vld [vmem:[%s2] sm:$0x7]
        %v281 = vlaneseq
        %v282 = vshrl.u32 %v281, 7
        %v283 = vsub.s32 0, %v282
        %v284 = vrot.slane %v279, %v283
        %v285 = vlaneseq
        %v286 = vshrl.u32 %v285, 7
        %v287 = vsub.s32 1, %v286
        %v288 = vrot.slane %v279, %v287
        %v289 = vlaneseq
        %v290 = vshrl.u32 %v289, 7
        %v291 = vsub.s32 2, %v290
        %v292 = vrot.slane %v279, %v291
        %vm296 = vcmask 261120
        %v298 = vsel %vm296, %v266, 0
        %300 = vmatprep.subr.mxu0 %v268
        %301 = vmatpush1.msra.mxu0 %v267
        %302 = vmatprep.subr.mxu0 %v271
        %303 = vmatpush1.msra.mxu0 %v270
        %304 = vmatprep.subr.mxu0 %v274
        %305 = vmatpush1.msra.mxu0 %v273
        %306 = vmatprep.subr.mxu0 %v277
        %307 = vmatpush1.msra.mxu0 %v276
        %308 = vmatprep.subr.mxu0 0.0
        %309 = vmatpush1.msra.mxu0 0.0
        %310 = vmatprep.subr.mxu0 0.0
        %311 = vmatpush1.msra.mxu0 0.0
        %312 = vmatprep.subr.mxu0 0.0
        %313 = vmatpush1.msra.mxu0 0.0
        %314 = vmatprep.subr.mxu0 0.0
        %315 = vmatpush1.msra.mxu0 0.0
        %316 = vmatprep.subr.mxu0 0.0
        %317 = vmatpush1.msra.mxu0 0.0
        %318 = vmatprep.subr.mxu0 0.0
        %319 = vmatpush1.msra.mxu0 0.0
        %320 = vmatprep.subr.mxu0 0.0
        %321 = vmatpush1.msra.mxu0 0.0
        %322 = vmatprep.subr.mxu0 0.0
        %323 = vmatpush1.msra.mxu0 0.0
        %324 = vmatprep.subr.mxu0 0.0
        %325 = vmatpush1.msra.mxu0 0.0
        %326 = vmatprep.subr.mxu0 0.0
        %327 = vmatpush1.msra.mxu0 0.0
        %328 = vmatprep.subr.mxu0 0.0
        %329 = vmatpush1.msra.mxu0 0.0
        %330 = vmatprep.subr.mxu0 0.0
        %331 = vmatpush1.msra.mxu0 0.0
        %332 = vmatprep.subr.mxu0 0.0
        %333 = vmatpush1.msra.mxu0 0.0
        %334 = vmatprep.subr.mxu0 0.0
        %335 = vmatpush1.msra.mxu0 0.0
        %336 = vmatprep.subr.mxu0 0.0
        %337 = vmatpush1.msra.mxu0 0.0
        %338 = vmatprep.subr.mxu0 0.0
        %339 = vmatpush1.msra.mxu0 0.0
        %340 = vmatprep.subr.mxu0 0.0
        %341 = vmatpush1.msra.mxu0 0.0
        %342 = vmatprep.subr.mxu0 0.0
        %343 = vmatpush1.msra.mxu0 0.0
        %344 = vmatprep.subr.mxu0 0.0
        %345 = vmatpush1.msra.mxu0 0.0
        %346 = vmatprep.subr.mxu0 0.0
        %347 = vmatpush1.msra.mxu0 0.0
        %348 = vmatprep.subr.mxu0 0.0
        %349 = vmatpush1.msra.mxu0 0.0
        %350 = vmatprep.subr.mxu0 0.0
        %351 = vmatpush1.msra.mxu0 0.0
        %352 = vmatprep.subr.mxu0 0.0
        %353 = vmatpush1.msra.mxu0 0.0
        %354 = vmatprep.subr.mxu0 0.0
        %355 = vmatpush1.msra.mxu0 0.0
        %356 = vmatprep.subr.mxu0 0.0
        %357 = vmatpush1.msra.mxu0 0.0
        %358 = vmatprep.subr.mxu0 0.0
        %359 = vmatpush1.msra.mxu0 0.0
        %360 = vmatprep.subr.mxu0 0.0
        %361 = vmatpush1.msra.mxu0 0.0
        %362 = vmatprep.subr.mxu0 0.0
        %363 = vmatpush1.msra.mxu0 0.0
        %364 = vmatprep.mubr.f32.mxu0 0.0
        %365 = vmatmul.mubr.f32.gmra.mrb[0].mxu0 %v298
        %v366 = vpop.f32.mrb[0].mxu0
        %v367 = vadd.f32 %v284, %v366
        %v368 = vpop.f32.mrb[0].mxu0
        %v369 = vadd.f32 %v288, %v368
        %370 = vdwg.mxu0
        %371 = vmatprep.subr.mxu0 0.0
        %372 = vmatpush1.msra.mxu0 %v269
        %373 = vmatprep.subr.mxu0 0.0
        %374 = vmatpush1.msra.mxu0 %v272
        %375 = vmatprep.subr.mxu0 0.0
        %376 = vmatpush1.msra.mxu0 %v275
        %377 = vmatprep.subr.mxu0 0.0
        %378 = vmatpush1.msra.mxu0 %v278
        %379 = vmatprep.subr.mxu0 0.0
        %380 = vmatpush1.msra.mxu0 0.0
        %381 = vmatprep.subr.mxu0 0.0
        %382 = vmatpush1.msra.mxu0 0.0
        %383 = vmatprep.subr.mxu0 0.0
        %384 = vmatpush1.msra.mxu0 0.0
        %385 = vmatprep.subr.mxu0 0.0
        %386 = vmatpush1.msra.mxu0 0.0
        %387 = vmatprep.subr.mxu0 0.0
        %388 = vmatpush1.msra.mxu0 0.0
        %389 = vmatprep.subr.mxu0 0.0
        %390 = vmatpush1.msra.mxu0 0.0
        %391 = vmatprep.subr.mxu0 0.0
        %392 = vmatpush1.msra.mxu0 0.0
        %393 = vmatprep.subr.mxu0 0.0
        %394 = vmatpush1.msra.mxu0 0.0
        %395 = vmatprep.subr.mxu0 0.0
        %396 = vmatpush1.msra.mxu0 0.0
        %397 = vmatprep.subr.mxu0 0.0
        %398 = vmatpush1.msra.mxu0 0.0
        %399 = vmatprep.subr.mxu0 0.0
        %400 = vmatpush1.msra.mxu0 0.0
        %401 = vmatprep.subr.mxu0 0.0
        %402 = vmatpush1.msra.mxu0 0.0
        %403 = vmatprep.subr.mxu0 0.0
        %404 = vmatpush1.msra.mxu0 0.0
        %405 = vmatprep.subr.mxu0 0.0
        %406 = vmatpush1.msra.mxu0 0.0
        %407 = vmatprep.subr.mxu0 0.0
        %408 = vmatpush1.msra.mxu0 0.0
        %409 = vmatprep.subr.mxu0 0.0
        %410 = vmatpush1.msra.mxu0 0.0
        %411 = vmatprep.subr.mxu0 0.0
        %412 = vmatpush1.msra.mxu0 0.0
        %413 = vmatprep.subr.mxu0 0.0
        %414 = vmatpush1.msra.mxu0 0.0
        %415 = vmatprep.subr.mxu0 0.0
        %416 = vmatpush1.msra.mxu0 0.0
        %417 = vmatprep.subr.mxu0 0.0
        %418 = vmatpush1.msra.mxu0 0.0
        %419 = vmatprep.subr.mxu0 0.0
        %420 = vmatpush1.msra.mxu0 0.0
        %421 = vmatprep.subr.mxu0 0.0
        %422 = vmatpush1.msra.mxu0 0.0
        %423 = vmatprep.subr.mxu0 0.0
        %424 = vmatpush1.msra.mxu0 0.0
        %425 = vmatprep.subr.mxu0 0.0
        %426 = vmatpush1.msra.mxu0 0.0
        %427 = vmatprep.subr.mxu0 0.0
        %428 = vmatpush1.msra.mxu0 0.0
        %429 = vmatprep.subr.mxu0 0.0
        %430 = vmatpush1.msra.mxu0 0.0
        %431 = vmatprep.subr.mxu0 0.0
        %432 = vmatpush1.msra.mxu0 0.0
        %433 = vmatprep.subr.mxu0 0.0
        %434 = vmatpush1.msra.mxu0 0.0
        %435 = vmatprep.mubr.f32.mxu0 0.0
        %436 = vmatmul.mubr.f32.gmra.mrb[0].mxu0 %v298
        %v437 = vpop.f32.mrb[0].mxu0
        %v438 = vadd.f32 %v292, %v437
        %v439 = vpop.f32.mrb[0].mxu0
        %440 = vdwg.mxu0
        %441 = vxpose.xlu0.b32.start [1/16] %v367, 128
        %442 = vxpose.xlu0.b32.cont [2/16] 0.0, 128
        %443 = vxpose.xlu0.b32.cont [3/16] 0.0, 128
        %444 = vxpose.xlu0.b32.cont [4/16] 0.0, 128
        %445 = vxpose.xlu0.b32.cont [5/16] 0.0, 128
        %446 = vxpose.xlu0.b32.cont [6/16] 0.0, 128
        %447 = vxpose.xlu0.b32.cont [7/16] 0.0, 128
        %448 = vxpose.xlu0.b32.cont [8/16] 0.0, 128
        %449 = vxpose.xlu0.b32.cont [9/16] 0.0, 128
        %450 = vxpose.xlu0.b32.cont [10/16] 0.0, 128
        %451 = vxpose.xlu0.b32.cont [11/16] 0.0, 128
        %452 = vxpose.xlu0.b32.cont [12/16] 0.0, 128
        %453 = vxpose.xlu0.b32.cont [13/16] 0.0, 128
        %454 = vxpose.xlu0.b32.cont [14/16] 0.0, 128
        %455 = vxpose.xlu0.b32.cont [15/16] 0.0, 128
        %456 = vxpose.xlu0.b32.end [16/16] 0.0, 128
        %v457 = vpop.trf.xlu0
        %v458 = vpop.trf.xlu0
        %v459 = vpop.trf.xlu0
        %v460 = vpop.trf.xlu0
        %v461 = vpop.trf.xlu0
        %v462 = vpop.trf.xlu0
        %v463 = vpop.trf.xlu0
        %v464 = vpop.trf.xlu0
        %v465 = vpop.trf.xlu0
        %v466 = vpop.trf.xlu0
        %v467 = vpop.trf.xlu0
        %v468 = vpop.trf.xlu0
        %v469 = vpop.trf.xlu0
        %v470 = vpop.trf.xlu0
        %v471 = vpop.trf.xlu0
        %v472 = vpop.trf.xlu0
        %vm473 = vcmask 64512
        %v475 = vsel %vm473, %v457, 0
        %v478 = vsel %vm473, %v458, 0
        %v481 = vsel %vm473, %v459, 0
        %v484 = vsel %vm473, %v460, 0
        %v487 = vsel %vm473, %v461, 0
        %v490 = vsel %vm473, %v462, 0
        %v493 = vsel %vm473, %v463, 0
        %v496 = vsel %vm473, %v464, 0
        %v499 = vsel %vm473, %v465, 0
        %v502 = vsel %vm473, %v466, 0
        %v505 = vsel %vm473, %v467, 0
        %v508 = vsel %vm473, %v468, 0
        %v511 = vsel %vm473, %v469, 0
        %v514 = vsel %vm473, %v470, 0
        %v517 = vsel %vm473, %v471, 0
        %v520 = vsel %vm473, %v472, 0
        %522 = vmatprep.subr.mxu0 0.0
        %523 = vmatpush1.msra.mxu0 %v369
        %524 = vmatprep.subr.mxu0 0.0
        %525 = vmatpush1.msra.mxu0 0.0
        %526 = vmatprep.subr.mxu0 0.0
        %527 = vmatpush1.msra.mxu0 0.0
        %528 = vmatprep.subr.mxu0 0.0
        %529 = vmatpush1.msra.mxu0 0.0
        %530 = vmatprep.subr.mxu0 0.0
        %531 = vmatpush1.msra.mxu0 0.0
        %532 = vmatprep.subr.mxu0 0.0
        %533 = vmatpush1.msra.mxu0 0.0
        %534 = vmatprep.subr.mxu0 0.0
        %535 = vmatpush1.msra.mxu0 0.0
        %536 = vmatprep.subr.mxu0 0.0
        %537 = vmatpush1.msra.mxu0 0.0
        %538 = vmatprep.subr.mxu0 0.0
        %539 = vmatpush1.msra.mxu0 0.0
        %540 = vmatprep.subr.mxu0 0.0
        %541 = vmatpush1.msra.mxu0 0.0
        %542 = vmatprep.subr.mxu0 0.0
        %543 = vmatpush1.msra.mxu0 0.0
        %544 = vmatprep.subr.mxu0 0.0
        %545 = vmatpush1.msra.mxu0 0.0
        %546 = vmatprep.subr.mxu0 0.0
        %547 = vmatpush1.msra.mxu0 0.0
        %548 = vmatprep.subr.mxu0 0.0
        %549 = vmatpush1.msra.mxu0 0.0
        %550 = vmatprep.subr.mxu0 0.0
        %551 = vmatpush1.msra.mxu0 0.0
        %552 = vmatprep.subr.mxu0 0.0
        %553 = vmatpush1.msra.mxu0 0.0
        %554 = vmatprep.subr.mxu0 0.0
        %555 = vmatpush1.msra.mxu0 0.0
        %556 = vmatprep.subr.mxu0 0.0
        %557 = vmatpush1.msra.mxu0 0.0
        %558 = vmatprep.subr.mxu0 0.0
        %559 = vmatpush1.msra.mxu0 0.0
        %560 = vmatprep.subr.mxu0 0.0
        %561 = vmatpush1.msra.mxu0 0.0
        %562 = vmatprep.subr.mxu0 0.0
        %563 = vmatpush1.msra.mxu0 0.0
        %564 = vmatprep.subr.mxu0 0.0
        %565 = vmatpush1.msra.mxu0 0.0
        %566 = vmatprep.subr.mxu0 0.0
        %567 = vmatpush1.msra.mxu0 0.0
        %568 = vmatprep.subr.mxu0 0.0
        %569 = vmatpush1.msra.mxu0 0.0
        %570 = vmatprep.subr.mxu0 0.0
        %571 = vmatpush1.msra.mxu0 0.0
        %572 = vmatprep.subr.mxu0 0.0
        %573 = vmatpush1.msra.mxu0 0.0
        %574 = vmatprep.subr.mxu0 0.0
        %575 = vmatpush1.msra.mxu0 0.0
        %576 = vmatprep.subr.mxu0 0.0
        %577 = vmatpush1.msra.mxu0 0.0
        %578 = vmatprep.subr.mxu0 0.0
        %579 = vmatpush1.msra.mxu0 0.0
        %580 = vmatprep.subr.mxu0 0.0
        %581 = vmatpush1.msra.mxu0 0.0
        %582 = vmatprep.subr.mxu0 0.0
        %583 = vmatpush1.msra.mxu0 0.0
        %584 = vmatprep.subr.mxu0 0.0
        %585 = vmatpush1.msra.mxu0 0.0
        %586 = vmatprep.mubr.f32.mxu0 0.0
        %587 = vmatmul.mubr.f32.gmra.mrb[0].mxu0 %v475
        %v588 = vpop.f32.mrb[0].mxu0
        %v589 = vadd.f32 0.0, %v588
        %v590 = vpop.f32.mrb[0].mxu0
        %591 = vmatprep.mubr.f32.mxu0 0.0
        %592 = vmatmul.mubr.f32.gmra.mrb[0].mxu0 %v478
        %v593 = vpop.f32.mrb[0].mxu0
        %v594 = vadd.f32 0.0, %v593
        %v595 = vpop.f32.mrb[0].mxu0
        %596 = vmatprep.mubr.f32.mxu0 0.0
        %597 = vmatmul.mubr.f32.gmra.mrb[0].mxu0 %v481
        %v598 = vpop.f32.mrb[0].mxu0
        %v599 = vadd.f32 0.0, %v598
        %v600 = vpop.f32.mrb[0].mxu0
        %601 = vmatprep.mubr.f32.mxu0 0.0
        %602 = vmatmul.mubr.f32.gmra.mrb[0].mxu0 %v484
        %v603 = vpop.f32.mrb[0].mxu0
        %v604 = vadd.f32 0.0, %v603
        %v605 = vpop.f32.mrb[0].mxu0
        %606 = vmatprep.mubr.f32.mxu0 0.0
        %607 = vmatmul.mubr.f32.gmra.mrb[0].mxu0 %v487
        %v608 = vpop.f32.mrb[0].mxu0
        %v609 = vpop.f32.mrb[0].mxu0
        %610 = vmatprep.mubr.f32.mxu0 0.0
        %611 = vmatmul.mubr.f32.gmra.mrb[0].mxu0 %v490
        %v612 = vpop.f32.mrb[0].mxu0
        %v613 = vpop.f32.mrb[0].mxu0
        %614 = vmatprep.mubr.f32.mxu0 0.0
        %615 = vmatmul.mubr.f32.gmra.mrb[0].mxu0 %v493
        %v616 = vpop.f32.mrb[0].mxu0
        %v617 = vpop.f32.mrb[0].mxu0
        %618 = vmatprep.mubr.f32.mxu0 0.0
        %619 = vmatmul.mubr.f32.gmra.mrb[0].mxu0 %v496
        %v620 = vpop.f32.mrb[0].mxu0
        %v621 = vpop.f32.mrb[0].mxu0
        %622 = vmatprep.mubr.f32.mxu0 0.0
        %623 = vmatmul.mubr.f32.gmra.mrb[0].mxu0 %v499
        %v624 = vpop.f32.mrb[0].mxu0
        %v625 = vpop.f32.mrb[0].mxu0
        %626 = vmatprep.mubr.f32.mxu0 0.0
        %627 = vmatmul.mubr.f32.gmra.mrb[0].mxu0 %v502
        %v628 = vpop.f32.mrb[0].mxu0
        %v629 = vpop.f32.mrb[0].mxu0
        %630 = vmatprep.mubr.f32.mxu0 0.0
        %631 = vmatmul.mubr.f32.gmra.mrb[0].mxu0 %v505
        %v632 = vpop.f32.mrb[0].mxu0
        %v633 = vpop.f32.mrb[0].mxu0
        %634 = vmatprep.mubr.f32.mxu0 0.0
        %635 = vmatmul.mubr.f32.gmra.mrb[0].mxu0 %v508
        %v636 = vpop.f32.mrb[0].mxu0
        %v637 = vpop.f32.mrb[0].mxu0
        %638 = vmatprep.mubr.f32.mxu0 0.0
        %639 = vmatmul.mubr.f32.gmra.mrb[0].mxu0 %v511
        %v640 = vpop.f32.mrb[0].mxu0
        %v641 = vpop.f32.mrb[0].mxu0
        %642 = vmatprep.mubr.f32.mxu0 0.0
        %643 = vmatmul.mubr.f32.gmra.mrb[0].mxu0 %v514
        %v644 = vpop.f32.mrb[0].mxu0
        %v645 = vpop.f32.mrb[0].mxu0
        %646 = vmatprep.mubr.f32.mxu0 0.0
        %647 = vmatmul.mubr.f32.gmra.mrb[0].mxu0 %v517
        %v648 = vpop.f32.mrb[0].mxu0
        %v649 = vpop.f32.mrb[0].mxu0
        %650 = vmatprep.mubr.f32.mxu0 0.0
        %651 = vmatmul.mubr.f32.gmra.mrb[0].mxu0 %v520
        %v652 = vpop.f32.mrb[0].mxu0
        %v653 = vpop.f32.mrb[0].mxu0
        %654 = vdwg.mxu0
        %v655 = vld [vmem:[%s3] sm:$0x1]
        %v657 = vlaneseq
        %v658 = vshrl.u32 %v657, 7
        %v659 = vsub.s32 0, %v658
        %v660 = vrot.slane %v655, %v659
        %v662 = vadd.f32 %v589, %v660
        %v663 = vadd.f32 %v594, %v660
        %v664 = vadd.f32 %v599, %v660
        %v665 = vadd.f32 %v604, %v660
        %666 = vmax.xlane.f32.xlu0 %v662
        %v667 = vpop.xlane.xlu0 %666
        %668 = vmax.xlane.f32.xlu0 %v663
        %v669 = vpop.xlane.xlu0 %668
        %670 = vmax.xlane.f32.xlu0 %v664
        %v671 = vpop.xlane.xlu0 %670
        %672 = vmax.xlane.f32.xlu0 %v665
        %v673 = vpop.xlane.xlu0 %672
        %v674 = vsub.f32 %v662, %v667
        %v675 = vsub.f32 %v663, %v669
        %v676 = vsub.f32 %v664, %v671
        %v677 = vsub.f32 %v665, %v673
        %v678 = vmul.f32 %v674, 1.442695
        %v679 = vpow.pop %v678
        %v680 = vmul.f32 %v675, 1.442695
        %v681 = vpow.pop %v680
        %v682 = vmul.f32 %v676, 1.442695
        %v683 = vpow.pop %v682
        %v684 = vmul.f32 %v677, 1.442695
        %v685 = vpow.pop %v684
        %686 = vadd.xlane.f32.xlu0 %v679
        %v687 = vpop.xlane.xlu0 %686
        %688 = vadd.xlane.f32.xlu0 %v681
        %v689 = vpop.xlane.xlu0 %688
        %690 = vadd.xlane.f32.xlu0 %v683
        %v691 = vpop.xlane.xlu0 %690
        %692 = vadd.xlane.f32.xlu0 %v685
        %v693 = vpop.xlane.xlu0 %692
        %v694 = vrcp.pop %v687
        %v695 = vrcp.pop %v689
        %v696 = vrcp.pop %v691
        %v697 = vrcp.pop %v693
        %v698 = vmul.f32 %v687, %v694
        %v699 = vmul.f32 %v689, %v695
        %v700 = vmul.f32 %v691, %v696
        %v701 = vmul.f32 %v693, %v697
        %v702 = vsub.f32 2.0, %v698
        %v703 = vsub.f32 2.0, %v699
        %v704 = vsub.f32 2.0, %v700
        %v705 = vsub.f32 2.0, %v701
        %v706 = vmul.f32 %v694, %v702
        %v707 = vmul.f32 %v695, %v703
        %v708 = vmul.f32 %v696, %v704
        %v709 = vmul.f32 %v697, %v705
        %v710 = vmul.f32 %v679, %v706
        %v711 = vmul.f32 %v681, %v707
        %v712 = vmul.f32 %v683, %v708
        %v713 = vmul.f32 %v685, %v709
        %v715 = vsel %vm296, %v438, 0
        %717 = vmatprep.subr.mxu0 0.0
        %718 = vmatpush1.msra.mxu0 %v710
        %719 = vmatprep.subr.mxu0 0.0
        %720 = vmatpush1.msra.mxu0 %v711
        %721 = vmatprep.subr.mxu0 0.0
        %722 = vmatpush1.msra.mxu0 %v712
        %723 = vmatprep.subr.mxu0 0.0
        %724 = vmatpush1.msra.mxu0 %v713
        %725 = vmatprep.subr.mxu0 0.0
        %726 = vmatpush1.msra.mxu0 0.0
        %727 = vmatprep.subr.mxu0 0.0
        %728 = vmatpush1.msra.mxu0 0.0
        %729 = vmatprep.subr.mxu0 0.0
        %730 = vmatpush1.msra.mxu0 0.0
        %731 = vmatprep.subr.mxu0 0.0
        %732 = vmatpush1.msra.mxu0 0.0
        %733 = vmatprep.subr.mxu0 0.0
        %734 = vmatpush1.msra.mxu0 0.0
        %735 = vmatprep.subr.mxu0 0.0
        %736 = vmatpush1.msra.mxu0 0.0
        %737 = vmatprep.subr.mxu0 0.0
        %738 = vmatpush1.msra.mxu0 0.0
        %739 = vmatprep.subr.mxu0 0.0
        %740 = vmatpush1.msra.mxu0 0.0
        %741 = vmatprep.subr.mxu0 0.0
        %742 = vmatpush1.msra.mxu0 0.0
        %743 = vmatprep.subr.mxu0 0.0
        %744 = vmatpush1.msra.mxu0 0.0
        %745 = vmatprep.subr.mxu0 0.0
        %746 = vmatpush1.msra.mxu0 0.0
        %747 = vmatprep.subr.mxu0 0.0
        %748 = vmatpush1.msra.mxu0 0.0
        %749 = vmatprep.subr.mxu0 0.0
        %750 = vmatpush1.msra.mxu0 0.0
        %751 = vmatprep.subr.mxu0 0.0
        %752 = vmatpush1.msra.mxu0 0.0
        %753 = vmatprep.subr.mxu0 0.0
        %754 = vmatpush1.msra.mxu0 0.0
        %755 = vmatprep.subr.mxu0 0.0
        %756 = vmatpush1.msra.mxu0 0.0
        %757 = vmatprep.subr.mxu0 0.0
        %758 = vmatpush1.msra.mxu0 0.0
        %759 = vmatprep.subr.mxu0 0.0
        %760 = vmatpush1.msra.mxu0 0.0
        %761 = vmatprep.subr.mxu0 0.0
        %762 = vmatpush1.msra.mxu0 0.0
        %763 = vmatprep.subr.mxu0 0.0
        %764 = vmatpush1.msra.mxu0 0.0
        %765 = vmatprep.subr.mxu0 0.0
        %766 = vmatpush1.msra.mxu0 0.0
        %767 = vmatprep.subr.mxu0 0.0
        %768 = vmatpush1.msra.mxu0 0.0
        %769 = vmatprep.subr.mxu0 0.0
        %770 = vmatpush1.msra.mxu0 0.0
        %771 = vmatprep.subr.mxu0 0.0
        %772 = vmatpush1.msra.mxu0 0.0
        %773 = vmatprep.subr.mxu0 0.0
        %774 = vmatpush1.msra.mxu0 0.0
        %775 = vmatprep.subr.mxu0 0.0
        %776 = vmatpush1.msra.mxu0 0.0
        %777 = vmatprep.subr.mxu0 0.0
        %778 = vmatpush1.msra.mxu0 0.0
        %779 = vmatprep.subr.mxu0 0.0
        %780 = vmatpush1.msra.mxu0 0.0
        %781 = vmatprep.mubr.f32.mxu0 0.0
        %782 = vmatmul.mubr.f32.gmra.mrb[0].mxu0 %v715
        %v783 = vpop.f32.mrb[0].mxu0
        %v784 = vadd.f32 0.0, %v783
        %v785 = vpop.f32.mrb[0].mxu0
        %786 = vdwg.mxu0
        %787 = vst [vmem:[%s265] sm:$0xff] %v710
        %788 = vst [vmem:[%s265 + $0x8] sm:$0xff] %v711
        %789 = vst [vmem:[%s265 + $0x10] sm:$0xff] %v712
        %790 = vst [vmem:[%s265 + $0x18] sm:$0xff] %v713
        %791 = vst [vmem:[%s258] sm:$0xff] %v784
        %s792 = sand.u32 %s124, 1
        %s793 = scalar_lea.sflag [#allocation4], %s792
        %s794 = sand.u32 %s124, 1
        %s795 = smul.addr %s794, 8
        %s796 = scalar_lea.vmem [#allocation7], %s795
        %s797 = sand.u32 %s150, 1
        %s798 = scalar_lea.sflag [#allocation9], %s797
        %s799 = sand.u32 %s150, 1
        %s800 = smul.addr %s799, 32
        %s801 = scalar_lea.vmem [#allocation8], %s800
        // Predicated region
        $region45: #{self_attention.1} parent=35 // pred_check
          %p802 = pneg %p134
        $region46: #{self_attention.1} parent=35 // pred_check_branch
          %804 = sbr.rel (%p802) target = $region48
        $region47: #{self_attention.1} parent=35 // pred_region
          %s806 = ssub.s32 128, 128
          %807 = vsyncadd %s793, %s806
          %s808 = smul.addr %s27, 128
          %s809 = scalar_lea.hbm %s4, %s808
          %s811 = sshll.u32 %s796, 4
          %s812 = int_to_ptr.vmem [resolvable:$true] %s811
          %814 = dma.vmem_to_hbm [thread:$0]  %s812, 128, %s809, %s793
        $region48: #{self_attention.1} parent=35 // pred_fallthru
          _
        // Predicated region
        $region49: #{self_attention.1} parent=35 // pred_check
          %p815 = pneg %p160
        $region50: #{self_attention.1} parent=35 // pred_check_branch
          %817 = sbr.rel (%p815) target = $region52
        $region51: #{self_attention.1} parent=35 // pred_region
          %s819 = ssub.s32 512, 512
          %820 = vsyncadd %s798, %s819
          %s821 = smul.addr %s27, 4
          %s822 = smul.addr %s821, 128
          %s823 = scalar_lea.hbm %s5, %s822
          %s824 = sshll.u32 %s801, 4
          %s825 = int_to_ptr.vmem [resolvable:$true] %s824
          %830 = dma.vmem_to_hbm [thread:$0]  %s825, 512, %s823, %s798, 128, 128, 8
        $region52: #{self_attention.1} parent=35 // pred_fallthru
          _
      $region36: #{self_attention.1} parent=5 // pred_fallthru
        _
      %p831 = scmp.le.s32.totalorder 2, %s22
      // Predicated region
      $region53: #{self_attention.1} parent=5 // pred_check
        %p832 = pneg %p831
      $region54: #{self_attention.1} parent=5 // pred_check_branch
        %834 = sbr.rel (%p832) target = $region56
      $region55: #{self_attention.1} parent=5 // pred_region
        %s835 = ssub.s32 %s22, 2
        // Predicated region
        $region57: #{self_attention.1} parent=55 // pred_check
          %p836 = pneg %p140
        $region58: #{self_attention.1} parent=55 // pred_check_branch
          %838 = sbr.rel (%p836) target = $region60
        $region59: #{self_attention.1} parent=55 // pred_region
          %s839 = sand.u32 %s125, 1
          %s840 = scalar_lea.sflag [#allocation4], %s839
          %s841 = sand.u32 %s125, 1
          %s842 = smul.addr %s841, 8
          %s843 = scalar_lea.vmem [#allocation7], %s842
          %844 = dma.done %s840, 128
        $region60: #{self_attention.1} parent=55 // pred_fallthru
          _
        // Predicated region
        $region61: #{self_attention.1} parent=55 // pred_check
          %p845 = pneg %p166
        $region62: #{self_attention.1} parent=55 // pred_check_branch
          %847 = sbr.rel (%p845) target = $region64
        $region63: #{self_attention.1} parent=55 // pred_region
          %s848 = sand.u32 %s151, 1
          %s849 = scalar_lea.sflag [#allocation9], %s848
          %s850 = sand.u32 %s151, 1
          %s851 = smul.addr %s850, 32
          %s852 = scalar_lea.vmem [#allocation8], %s851
          %853 = dma.done %s849, 512
        $region64: #{self_attention.1} parent=55 // pred_fallthru
          _
      $region56: #{self_attention.1} parent=5 // pred_fallthru
        _
    $region6: #{self_attention.1} parent=1 // loop_footer
      %s26 = sadd.s32 1, %s22
    $region7: #{self_attention.1} parent=1 // loop_footer_branch
      %21 = sbr.rel target = $region3
    $region8: #{self_attention.1} parent=1 // loop_exit
      _
    %854 = vsyncpa [#allocation3], 1
    %s855 = scalar_lea.sflag [#allocation3], 1
    %856 = vsyncpa %s855, 1
    %857 = vsyncpa [#allocation6], 1
    %858 = vsyncpa [#allocation4], 1
    %s859 = scalar_lea.sflag [#allocation4], 1
    %860 = vsyncpa %s859, 1
    %861 = vsyncpa [#allocation9], 1
    %s862 = scalar_lea.sflag [#allocation9], 1
    %863 = vsyncpa %s862, 1

</llo_original>
